<compile_context>
chip_gen: v6e
topology: v6e:2x2x1
jax: 0.10.0
libtpu: 0.0.40
codegen_flags: <defaults>
</compile_context>

<pallas_src>
import jax
import jax.numpy as jnp
from jax import lax
from jax.experimental import pallas as pl
from jax.experimental.pallas import tpu as pltpu

# Budgets are in f32-equivalent elements so in-kernel f32 temporaries are
# bounded independently of the input dtype.
_VMEM_LIMIT_BYTES = 32 * 1024 * 1024     # raises v5e's 16 MiB scoped default; safe on v6e/v7x
_TWO_PASS_BLOCK_ELEMS = 1 << 20          # ~4 MiB f32 per x block (two-pass path)
_FUSED_SLAB_ELEMS = 1 << 19              # ~2 MiB f32 per channel slab (fused path)


def _sublane_align(itemsize):
    # packed sublane tile: 8 rows for 4-byte, 16 for 2-byte, 32 for 1-byte dtypes
    return max(8, 32 // itemsize)


# ---------------------------------------------------------------------------
# Tile selection
# ---------------------------------------------------------------------------
def _choose_tiles_3d(B, C, HW, itemsize, target_elems=_TWO_PASS_BLOCK_ELEMS):
    align_c = _sublane_align(itemsize)
    c_unit = align_c if C % align_c == 0 else C          # full-C blocks are always legal

    # HW tile: prefer full rows (contiguous DMA); otherwise the largest
    # 128-multiple divisor; as a last resort a fixed <=2048-lane tile on a
    # cdiv grid with masked statistics.
    budget_hw = max(128, target_elems // c_unit)
    if HW <= budget_hw:
        hw_tile = HW
    else:
        hw_tile = 0
        if HW % 128 == 0:
            t = (budget_hw // 128) * 128
            while t >= 128:
                if HW % t == 0:
                    hw_tile = t
                    break
                t -= 128
        if hw_tile < 1024:
            hw_tile = min(2048, (budget_hw // 128) * 128)
    ragged_hw = (HW % hw_tile != 0)
    n_hw = pl.cdiv(HW, hw_tile)

    # Grow the batch tile first (keeps per-channel accumulators small), then
    # the channel tile, until the block reaches the element budget.
    b_tile = 1
    while (b_tile * 2 <= B and B % (b_tile * 2) == 0
           and b_tile * 2 * c_unit * hw_tile <= target_elems):
        b_tile *= 2
    c_tile = c_unit
    while (c_tile * 2 <= C and C % (c_tile * 2) == 0 and c_tile * 2 <= 128
           and b_tile * c_tile * 2 * hw_tile <= target_elems):
        c_tile *= 2
    return b_tile, c_tile, hw_tile, n_hw, ragged_hw


def _choose_fused_c_tile(B, C, HW, itemsize, slab_elems=_FUSED_SLAB_ELEMS):
    align_c = _sublane_align(itemsize)
    c_unit = align_c if C % align_c == 0 else C
    if B * c_unit * HW > slab_elems:
        return None
    c_tile = c_unit
    # strict "< C" keeps >= 2 channel tiles whenever possible (v7x megacore)
    while (c_tile * 2 < C and C % (c_tile * 2) == 0
           and B * c_tile * 2 * HW <= slab_elems):
        c_tile *= 2
    return c_tile


def _choose_fused2d_c_tile(B, C, slab_elems=_FUSED_SLAB_ELEMS):
    c_unit = 128 if C % 128 == 0 else C
    if B * c_unit > slab_elems:
        return None
    c_tile = c_unit
    while (c_tile * 2 < C and C % (c_tile * 2) == 0
           and B * c_tile * 2 <= slab_elems):
        c_tile *= 2
    return c_tile


# ---------------------------------------------------------------------------
# Kernels
# ---------------------------------------------------------------------------
def _make_fused_kernel_4d(n, eps):
    """Single-read BN: stats + normalize on a VMEM-resident (B, C_t, HW) slab."""
    inv_n = 1.0 / float(n)

    def kernel(x_ref, w_ref, b_ref, o_ref, mean_ref, var_ref):
        x = x_ref[...].astype(jnp.float32)                          # (B, C_t, HW)
        s = jnp.sum(jnp.sum(x, axis=2, keepdims=True), axis=0)      # (C_t, 1)
        sq = jnp.sum(jnp.sum(x * x, axis=2, keepdims=True), axis=0)  # (C_t, 1)
        mean = s * inv_n
        var = jnp.maximum(sq * inv_n - mean * mean, 0.0)
        scale = w_ref[...] * lax.rsqrt(var + eps)                   # (C_t, 1)
        shift = b_ref[...] - mean * scale
        o_ref[...] = (x * scale + shift).astype(o_ref.dtype)        # broadcast over B & lanes
        mean_ref[...] = mean
        var_ref[...] = var

    return kernel


def _make_fused_kernel_2d(n, eps):
    """Lane-dense BN for 2D inputs: channels on lanes, batch on sublanes."""
    inv_n = 1.0 / float(n)

    def kernel(x_ref, w_ref, b_ref, o_ref, mean_ref, var_ref):
        x = x_ref[...].astype(jnp.float32)                          # (B, C_t)
        s = jnp.sum(x, axis=0, keepdims=True)                       # (1, C_t)
        sq = jnp.sum(x * x, axis=0, keepdims=True)
        mean = s * inv_n
        var = jnp.maximum(sq * inv_n - mean * mean, 0.0)
        scale = w_ref[...] * lax.rsqrt(var + eps)
        shift = b_ref[...] - mean * scale
        o_ref[...] = (x * scale + shift).astype(o_ref.dtype)
        mean_ref[...] = mean
        var_ref[...] = var

    return kernel


def _make_stats_kernel(b_tile, c_tile, hw_tile, hw_total, ragged_hw):
    """Pass-1: accumulate per-channel sum / sum-of-squares directly into the
    (1, C_t, 128) output blocks (resident across the arbitrary b/hw axes).
    Hot loop uses 128-lane VPU adds only; the single cross-lane reduction
    happens once in the XLA finalize."""
    n_full = hw_tile // 128
    rem = hw_tile - n_full * 128

    def kernel(x_ref, sum_ref, sumsq_ref):
        b = pl.program_id(2)
        hw = pl.program_id(3)

        @pl.when(jnp.logical_and(b == 0, hw == 0))
        def _():
            sum_ref[...] = jnp.zeros_like(sum_ref)
            sumsq_ref[...] = jnp.zeros_like(sumsq_ref)

        hw_start = hw * hw_tile

        def add_chunk(off, width):
            c0 = x_ref[:, :, pl.ds(off, width)].astype(jnp.float32)   # (B_t, C_t, width)
            if ragged_hw:
                lane = lax.broadcasted_iota(jnp.int32, (b_tile, c_tile, width), 2)
                c0 = jnp.where(hw_start + off + lane < hw_total, c0, 0.0)
            ps = jnp.sum(c0, axis=0, keepdims=True)                   # (1, C_t, width)
            pq = jnp.sum(c0 * c0, axis=0, keepdims=True)
            if width == 128:
                sum_ref[...] += ps
                sumsq_ref[...] += pq
            else:
                sum_ref[:, :, :width] += ps
                sumsq_ref[:, :, :width] += pq

        if n_full > 0:
            if n_full <= 16:
                for j in range(n_full):                               # static unroll
                    add_chunk(j * 128, 128)
            else:
                def body(j, carry):
                    add_chunk(pl.multiple_of(j * 128, 128), 128)
                    return carry
                lax.fori_loop(0, n_full, body, 0, unroll=4)
        if rem > 0:
            add_chunk(n_full * 128, rem)

    return kernel


def _norm_kernel(x_ref, scale_ref, shift_ref, o_ref):
    """Pass-2: out = x * scale + shift (scale/shift pre-fused with mean/var/affine)."""
    x = x_ref[...].astype(jnp.float32)                                # (B_t, C_t, HW_t)
    o_ref[...] = (x * scale_ref[...] + shift_ref[...]).astype(o_ref.dtype)


# ---------------------------------------------------------------------------
# pallas_call wrappers
# ---------------------------------------------------------------------------
def _fused_forward_4d(x3, weight, bias, eps, c_tile):
    B, C, HW = x3.shape
    kernel = _make_fused_kernel_4d(B * HW, eps)
    w2 = weight.astype(jnp.float32).reshape(C, 1)
    b2 = bias.astype(jnp.float32).reshape(C, 1)
    out3, mean, var = pl.pallas_call(
        kernel,
        out_shape=(jax.ShapeDtypeStruct((B, C, HW), x3.dtype),
                   jax.ShapeDtypeStruct((C, 1), jnp.float32),
                   jax.ShapeDtypeStruct((C, 1), jnp.float32)),
        grid_spec=pltpu.PrefetchScalarGridSpec(
            num_scalar_prefetch=0,
            grid=(C // c_tile,),
            in_specs=[pl.BlockSpec((B, c_tile, HW), lambda c: (0, c, 0)),
                      pl.BlockSpec((c_tile, 1), lambda c: (c, 0)),
                      pl.BlockSpec((c_tile, 1), lambda c: (c, 0))],
            out_specs=(pl.BlockSpec((B, c_tile, HW), lambda c: (0, c, 0)),
                       pl.BlockSpec((c_tile, 1), lambda c: (c, 0)),
                       pl.BlockSpec((c_tile, 1), lambda c: (c, 0)))),
        compiler_params=pltpu.CompilerParams(
            dimension_semantics=("parallel",),
            vmem_limit_bytes=_VMEM_LIMIT_BYTES),
    )(x3, w2, b2)
    return out3, mean.reshape(C), var.reshape(C)


def _fused_forward_2d(x2, weight, bias, eps, c_tile):
    B, C = x2.shape
    kernel = _make_fused_kernel_2d(B, eps)
    w2 = weight.astype(jnp.float32).reshape(1, C)
    b2 = bias.astype(jnp.float32).reshape(1, C)
    out2, mean, var = pl.pallas_call(
        kernel,
        out_shape=(jax.ShapeDtypeStruct((B, C), x2.dtype),
                   jax.ShapeDtypeStruct((1, C), jnp.float32),
                   jax.ShapeDtypeStruct((1, C), jnp.float32)),
        grid_spec=pltpu.PrefetchScalarGridSpec(
            num_scalar_prefetch=0,
            grid=(C // c_tile,),
            in_specs=[pl.BlockSpec((B, c_tile), lambda c: (0, c)),
                      pl.BlockSpec((1, c_tile), lambda c: (0, c)),
                      pl.BlockSpec((1, c_tile), lambda c: (0, c))],
            out_specs=(pl.BlockSpec((B, c_tile), lambda c: (0, c)),
                       pl.BlockSpec((1, c_tile), lambda c: (0, c)),
                       pl.BlockSpec((1, c_tile), lambda c: (0, c)))),
        compiler_params=pltpu.CompilerParams(
            dimension_semantics=("parallel",),
            vmem_limit_bytes=_VMEM_LIMIT_BYTES),
    )(x2, w2, b2)
    return out2, mean.reshape(C), var.reshape(C)


def _stats_two_pass(x3, b_tile, c_tile, hw_tile, n_hw, ragged_hw):
    B, C, HW = x3.shape
    n_c = C // c_tile
    n_b = B // b_tile
    # v7x megacore: if there is only one channel tile, split the batch range
    # into 2 "parallel" partial-sum groups combined in the finalize.
    n_split = 2 if (n_c == 1 and n_b >= 2 and n_b % 2 == 0) else 1
    nb_inner = n_b // n_split

    kernel = _make_stats_kernel(b_tile, c_tile, hw_tile, HW, ragged_hw)
    sum128, sq128 = pl.pallas_call(
        kernel,
        out_shape=(jax.ShapeDtypeStruct((n_split, C, 128), jnp.float32),
                   jax.ShapeDtypeStruct((n_split, C, 128), jnp.float32)),
        grid_spec=pltpu.PrefetchScalarGridSpec(
            num_scalar_prefetch=0,
            grid=(n_split, n_c, nb_inner, n_hw),
            in_specs=[pl.BlockSpec((b_tile, c_tile, hw_tile),
                                   lambda s, c, b, hw: (s * nb_inner + b, c, hw))],
            out_specs=(pl.BlockSpec((1, c_tile, 128), lambda s, c, b, hw: (s, c, 0)),
                       pl.BlockSpec((1, c_tile, 128), lambda s, c, b, hw: (s, c, 0)))),
        compiler_params=pltpu.CompilerParams(
            dimension_semantics=("parallel", "parallel", "arbitrary", "arbitrary"),
            vmem_limit_bytes=_VMEM_LIMIT_BYTES),
    )(x3)
    # Tiny finalize: single cross-lane reduce + partial-sum combine (XLA).
    return jnp.sum(sum128, axis=(0, 2)), jnp.sum(sq128, axis=(0, 2))


def _normalize_two_pass(x3, scale2, shift2, b_tile, c_tile, hw_tile, n_hw):
    B, C, HW = x3.shape
    n_c = C // c_tile
    n_b = B // b_tile
    return pl.pallas_call(
        _norm_kernel,
        out_shape=jax.ShapeDtypeStruct((B, C, HW), x3.dtype),
        grid_spec=pltpu.PrefetchScalarGridSpec(
            num_scalar_prefetch=0,
            grid=(n_c, n_b, n_hw),
            in_specs=[pl.BlockSpec((b_tile, c_tile, hw_tile), lambda c, b, hw: (b, c, hw)),
                      pl.BlockSpec((c_tile, 1), lambda c, b, hw: (c, 0)),
                      pl.BlockSpec((c_tile, 1), lambda c, b, hw: (c, 0))],
            out_specs=pl.BlockSpec((b_tile, c_tile, hw_tile), lambda c, b, hw: (b, c, hw))),
        compiler_params=pltpu.CompilerParams(
            dimension_semantics=("parallel", "parallel", "parallel"),
            vmem_limit_bytes=_VMEM_LIMIT_BYTES),
    )(x3, scale2, shift2)


# ---------------------------------------------------------------------------
# Host-side finalize / public entry point
# ---------------------------------------------------------------------------
def _update_running_stats(running_mean, running_var, mean, var, n, momentum):
    # TODO(synk): PyTorch's unbiased variance is NaN for n == 1; we substitute the biased value.
    bessel = float(n) / float(max(n - 1, 1))
    rm = running_mean.astype(jnp.float32) * (1.0 - momentum) + mean * momentum
    rv = running_var.astype(jnp.float32) * (1.0 - momentum) + (var * bessel) * momentum
    return rm.astype(running_mean.dtype), rv.astype(running_var.dtype)


def batch_norm_v1(x, weight, bias, running_mean, running_var, *,
                  eps=1e-5, momentum=0.01, training=True, force_two_pass=False):
    """BatchNorm_v1 forward. Returns (out, new_running_mean, new_running_var).

    Like the PyTorch module, a 2D input (B, C) is treated as (B, C, 1, 1) and a
    4D output is returned.
    """
    isz = jnp.dtype(x.dtype).itemsize
    input_2d = (x.ndim == 2)

    # ---- dedicated lane-dense path for 2D inputs --------------------------
    if input_2d and training and not force_two_pass:
        B2d, C2d = x.shape
        c_tile2d = _choose_fused2d_c_tile(B2d, C2d)
        if c_tile2d is not None:
            out2, mean, var = _fused_forward_2d(x, weight, bias, eps, c_tile2d)
            rm_new, rv_new = _update_running_stats(
                running_mean, running_var, mean, var, B2d, momentum)
            return out2.reshape(B2d, C2d, 1, 1), rm_new, rv_new
        # TODO(synk): very large 2D inputs fall back to the lane-sparse (B,C,1,1) path below.

    if input_2d:
        x = x[:, :, None, None]

    B, C, H, W = x.shape
    HW = H * W
    N = B * HW
    x3 = x.reshape(B, C, HW)                 # free reshape, no transpose / copy

    # ---- fused single-read path (tensor slab fits VMEM) --------------------
    if training and not force_two_pass:
        c_tile_f = _choose_fused_c_tile(B, C, HW, isz)
        if c_tile_f is not None:
            out3, mean, var = _fused_forward_4d(x3, weight, bias, eps, c_tile_f)
            rm_new, rv_new = _update_running_stats(
                running_mean, running_var, mean, var, N, momentum)
            return out3.reshape(B, C, H, W), rm_new, rv_new

    # ---- two-pass path ------------------------------------------------------
    b_tile, c_tile, hw_tile, n_hw, ragged_hw = _choose_tiles_3d(B, C, HW, isz)

    if training:
        sum_c, sq_c = _stats_two_pass(x3, b_tile, c_tile, hw_tile, n_hw, ragged_hw)
        mean = sum_c / N
        var = jnp.maximum(sq_c / N - mean * mean, 0.0)          # biased variance
        rm_new, rv_new = _update_running_stats(
            running_mean, running_var, mean, var, N, momentum)
    else:
        mean = running_mean.astype(jnp.float32)
        var = running_var.astype(jnp.float32)
        rm_new, rv_new = running_mean, running_var

    # Tiny (C,) finalize: fuse mean/var/affine into scale & shift (done in XLA,
    # which is already needed for the running-stats update above).
    scale = (weight.astype(jnp.float32) * lax.rsqrt(var + eps)).reshape(C, 1)
    shift = bias.astype(jnp.float32).reshape(C, 1) - mean.reshape(C, 1) * scale

    out3 = _normalize_two_pass(x3, scale, shift, b_tile, c_tile, hw_tile, n_hw)
    # TODO(synk): num_batches_tracked += 1 is integer bookkeeping with no tensor math; handle host-side.
    return out3.reshape(B, C, H, W), rm_new, rv_new


# ---------------------------------------------------------------------------
# Reference + self-test
# ---------------------------------------------------------------------------
def _reference(x, w, b, rm, rv, eps, momentum):
    if x.ndim == 2:
        x = x[:, :, None, None]
    B, C, H, W = x.shape
    y = jnp.transpose(x, (1, 0, 2, 3)).reshape(C, -1).astype(jnp.float32)
    mean = y.mean(axis=1)
    var = y.var(axis=1)
    var2 = y.var(axis=1, ddof=1)
    rm_new = rm * (1 - momentum) + mean * momentum
    rv_new = rv * (1 - momentum) + var2 * momentum
    out = (x.astype(jnp.float32) - mean.reshape(1, C, 1, 1)) * lax.rsqrt(
        var.reshape(1, C, 1, 1) + eps)
    out = out * w.reshape(1, C, 1, 1) + b.reshape(1, C, 1, 1)
    return out.astype(x.dtype), rm_new, rv_new


if __name__ == "__main__":
    key = jax.random.PRNGKey(0)
    kx, kw, kb, k2 = jax.random.split(key, 4)
    eps, momentum = 1e-5, 0.01

    # ---- 4D input (B, C, H, W) ---------------------------------------------
    B, C, H, W = 2, 4, 16, 16
    x = jax.random.normal(kx, (B, C, H, W), dtype=jnp.float32)
    weight = 1.0 + 0.1 * jax.random.normal(kw, (C,), dtype=jnp.float32)
    bias = 0.1 * jax.random.normal(kb, (C,), dtype=jnp.float32)
    running_mean = jnp.zeros((C,), jnp.float32)
    running_var = jnp.ones((C,), jnp.float32)

    ref_out, ref_rm, ref_rv = _reference(
        x, weight, bias, running_mean, running_var, eps, momentum)

    # (a) fused single-read path (small tensors)
    out, rm_new, rv_new = batch_norm_v1(
        x, weight, bias, running_mean, running_var, eps=eps, momentum=momentum)
    jax.block_until_ready((out, rm_new, rv_new))
    assert jnp.allclose(out, ref_out, atol=1e-4, rtol=1e-4)
    assert jnp.allclose(rm_new, ref_rm, atol=1e-5)
    assert jnp.allclose(rv_new, ref_rv, atol=1e-5)

    # (b) two-pass (stats + normalize) path used for large tensors
    out2p, rm2p, rv2p = batch_norm_v1(
        x, weight, bias, running_mean, running_var,
        eps=eps, momentum=momentum, force_two_pass=True)
    jax.block_until_ready((out2p, rm2p, rv2p))
    assert jnp.allclose(out2p, ref_out, atol=1e-4, rtol=1e-4)
    assert jnp.allclose(rm2p, ref_rm, atol=1e-5)
    assert jnp.allclose(rv2p, ref_rv, atol=1e-5)

    # ---- 2D input (B, C): module unsqueezes to (B, C, 1, 1) -----------------
    B2, C2 = 8, 32
    x2 = jax.random.normal(k2, (B2, C2), dtype=jnp.float32)
    w2 = jnp.ones((C2,), jnp.float32)
    b2 = jnp.zeros((C2,), jnp.float32)
    rm2 = jnp.zeros((C2,), jnp.float32)
    rv2 = jnp.ones((C2,), jnp.float32)
    ref2_out, ref2_rm, ref2_rv = _reference(x2, w2, b2, rm2, rv2, eps, momentum)
    out2, rm_new2, rv_new2 = batch_norm_v1(
        x2, w2, b2, rm2, rv2, eps=eps, momentum=momentum)
    jax.block_until_ready((out2, rm_new2, rv_new2))
    assert out2.shape == (B2, C2, 1, 1)
    assert jnp.allclose(out2, ref2_out, atol=1e-4, rtol=1e-4)
    assert jnp.allclose(rm_new2, ref2_rm, atol=1e-5)
    assert jnp.allclose(rv_new2, ref2_rv, atol=1e-5)

    print("KERNEL_OK")
</pallas_src>

<mosaic_0001>
module attributes {stable_mosaic.version = 11 : i64} {
  func.func @kernel(%arg0: i32, %arg1: memref<2x4x256xf32, #tpu.memory_space<vmem>>, %arg2: memref<4x1xf32, #tpu.memory_space<vmem>>, %arg3: memref<4x1xf32, #tpu.memory_space<vmem>>, %arg4: memref<2x4x256xf32, #tpu.memory_space<vmem>>, %arg5: memref<4x1xf32, #tpu.memory_space<vmem>>, %arg6: memref<4x1xf32, #tpu.memory_space<vmem>>) attributes {dimension_semantics = [#tpu.dimension_semantics<parallel>], iteration_bounds = array<i64: 1>, scalar_prefetch = 0 : i64, scratch_operands = 0 : i64, tpu.core_type = #tpu.core_type<tc>, window_params = [{transform_indices = @transform_0, window_bounds = array<i64: 2, 4, 256>}, {transform_indices = @transform_1, window_bounds = array<i64: 4, 1>}, {transform_indices = @transform_2, window_bounds = array<i64: 4, 1>}, {transform_indices = @transform_3, window_bounds = array<i64: 2, 4, 256>}, {transform_indices = @transform_4, window_bounds = array<i64: 4, 1>}, {transform_indices = @transform_5, window_bounds = array<i64: 4, 1>}]} {
    %c0 = arith.constant 0 : index
    %c0_0 = arith.constant 0 : index
    %c0_1 = arith.constant 0 : index
    %0 = vector.load %arg1[%c0, %c0_0, %c0_1] : memref<2x4x256xf32, #tpu.memory_space<vmem>>, vector<2x4x256xf32>
    %cst = arith.constant dense<0.000000e+00> : vector<2x4xf32>
    %1 = vector.multi_reduction <add>, %0, %cst [2] : vector<2x4x256xf32> to vector<2x4xf32>
    %2 = vector.shape_cast %1 : vector<2x4xf32> to vector<2x4x1xf32>
    %cst_2 = arith.constant dense<0.000000e+00> : vector<4x1xf32>
    %3 = vector.multi_reduction <add>, %2, %cst_2 [0] : vector<2x4x1xf32> to vector<4x1xf32>
    %4 = arith.mulf %0, %0 : vector<2x4x256xf32>
    %cst_3 = arith.constant dense<0.000000e+00> : vector<2x4xf32>
    %5 = vector.multi_reduction <add>, %4, %cst_3 [2] : vector<2x4x256xf32> to vector<2x4xf32>
    %6 = vector.shape_cast %5 : vector<2x4xf32> to vector<2x4x1xf32>
    %cst_4 = arith.constant dense<0.000000e+00> : vector<4x1xf32>
    %7 = vector.multi_reduction <add>, %6, %cst_4 [0] : vector<2x4x1xf32> to vector<4x1xf32>
    %cst_5 = arith.constant 0.001953125 : f32
    %8 = vector.broadcast %cst_5 : f32 to vector<4x1xf32>
    %9 = arith.mulf %3, %8 : vector<4x1xf32>
    %cst_6 = arith.constant 0.001953125 : f32
    %10 = vector.broadcast %cst_6 : f32 to vector<4x1xf32>
    %11 = arith.mulf %7, %10 : vector<4x1xf32>
    %12 = arith.mulf %9, %9 : vector<4x1xf32>
    %13 = arith.subf %11, %12 : vector<4x1xf32>
    %cst_7 = arith.constant 0.000000e+00 : f32
    %14 = vector.broadcast %cst_7 : f32 to vector<4x1xf32>
    %15 = arith.maximumf %13, %14 : vector<4x1xf32>
    %c0_8 = arith.constant 0 : index
    %c0_9 = arith.constant 0 : index
    %16 = vector.load %arg2[%c0_8, %c0_9] : memref<4x1xf32, #tpu.memory_space<vmem>>, vector<4x1xf32>
    %cst_10 = arith.constant 9.99999974E-6 : f32
    %17 = vector.broadcast %cst_10 : f32 to vector<4x1xf32>
    %18 = arith.addf %15, %17 : vector<4x1xf32>
    %19 = math.rsqrt %18 : vector<4x1xf32>
    %20 = arith.mulf %16, %19 : vector<4x1xf32>
    %c0_11 = arith.constant 0 : index
    %c0_12 = arith.constant 0 : index
    %21 = vector.load %arg3[%c0_11, %c0_12] : memref<4x1xf32, #tpu.memory_space<vmem>>, vector<4x1xf32>
    %22 = arith.mulf %9, %20 : vector<4x1xf32>
    %23 = arith.subf %21, %22 : vector<4x1xf32>
    %24 = vector.shape_cast %20 : vector<4x1xf32> to vector<1x4x1xf32>
    %25 = vector.broadcast %24 : vector<1x4x1xf32> to vector<2x4x256xf32>
    %26 = arith.mulf %0, %25 : vector<2x4x256xf32>
    %27 = vector.shape_cast %23 : vector<4x1xf32> to vector<1x4x1xf32>
    %28 = vector.broadcast %27 : vector<1x4x1xf32> to vector<2x4x256xf32>
    %29 = arith.addf %26, %28 : vector<2x4x256xf32>
    %c0_13 = arith.constant 0 : index
    %c0_14 = arith.constant 0 : index
    %c0_15 = arith.constant 0 : index
    %30 = vector.load %arg4[%c0_13, %c0_14, %c0_15] : memref<2x4x256xf32, #tpu.memory_space<vmem>>, vector<2x4x256xf32>
    tpu.vector_store %arg4[%c0_13, %c0_14, %c0_15], %29 {strides = array<i32>} : memref<2x4x256xf32, #tpu.memory_space<vmem>>, vector<2x4x256xf32>,
    %c0_16 = arith.constant 0 : index
    %c0_17 = arith.constant 0 : index
    %31 = vector.load %arg5[%c0_16, %c0_17] : memref<4x1xf32, #tpu.memory_space<vmem>>, vector<4x1xf32>
    tpu.vector_store %arg5[%c0_16, %c0_17], %9 {strides = array<i32>} : memref<4x1xf32, #tpu.memory_space<vmem>>, vector<4x1xf32>,
    %c0_18 = arith.constant 0 : index
    %c0_19 = arith.constant 0 : index
    %32 = vector.load %arg6[%c0_18, %c0_19] : memref<4x1xf32, #tpu.memory_space<vmem>>, vector<4x1xf32>
    tpu.vector_store %arg6[%c0_18, %c0_19], %15 {strides = array<i32>} : memref<4x1xf32, #tpu.memory_space<vmem>>, vector<4x1xf32>,
    return
  }
  func.func @transform_0(%arg0: i32) -> (i32, i32, i32) {
    %c0_i32 = arith.constant 0 : i32
    %c0_i32_0 = arith.constant 0 : i32
    %c0_i32_1 = arith.constant 0 : i32
    return %c0_i32, %arg0, %c0_i32_0 : i32, i32, i32
  }
  func.func @transform_1(%arg0: i32) -> (i32, i32) {
    %c0_i32 = arith.constant 0 : i32
    %c0_i32_0 = arith.constant 0 : i32
    return %arg0, %c0_i32 : i32, i32
  }
  func.func @transform_2(%arg0: i32) -> (i32, i32) {
    %c0_i32 = arith.constant 0 : i32
    %c0_i32_0 = arith.constant 0 : i32
    return %arg0, %c0_i32 : i32, i32
  }
  func.func @transform_3(%arg0: i32) -> (i32, i32, i32) {
    %c0_i32 = arith.constant 0 : i32
    %c0_i32_0 = arith.constant 0 : i32
    %c0_i32_1 = arith.constant 0 : i32
    return %c0_i32, %arg0, %c0_i32_0 : i32, i32, i32
  }
  func.func @transform_4(%arg0: i32) -> (i32, i32) {
    %c0_i32 = arith.constant 0 : i32
    %c0_i32_0 = arith.constant 0 : i32
    return %arg0, %c0_i32 : i32, i32
  }
  func.func @transform_5(%arg0: i32) -> (i32, i32) {
    %c0_i32 = arith.constant 0 : i32
    %c0_i32_0 = arith.constant 0 : i32
    return %arg0, %c0_i32 : i32, i32
  }
}

</mosaic_0001>

<llo_original>
// kernel: tpu_custom_call.1
$region0: #{tpu_custom_call.1}
  #allocation0 [shape = 'u32[]', space=smem, size = 0x4, offset = 0x4, fixed_abs, tag = 'smem constant byte address 0x4 - core index']
  #allocation1 [shape = 'u32[144,128]{1,0:T(1,128)}', space=vmem, size = 0x12000, scoped, tag = 'internal scratch']
  %s0 = inlined_call_operand.hbm [shape: f32[2,4,256], index: 0, kind: input, shape index: {}]
  %s1 = inlined_call_operand.vmem [shape: f32[4,1], index: 1, kind: input, shape index: {}]
  %s2 = inlined_call_operand.vmem [shape: f32[4,1], index: 2, kind: input, shape index: {}]
  %s3 = inlined_call_operand.hbm [shape: f32[2,4,256], index: 3, kind: output, shape index: {0}]
  %s4 = inlined_call_operand.vmem [shape: f32[4,1], index: 4, kind: output, shape index: {1}]
  %s5 = inlined_call_operand.vmem [shape: f32[4,1], index: 5, kind: output, shape index: {2}]
  %6 = xla_tuple %s3, %s4, %s5
  %s7 = sld [smem:[#allocation0]]
  $region42: #{tpu_custom_call.1} parent=0
    _
  %s9 = ssub.s32 1, %s7
  %s10 = scalar_select 0, %s9, %s7
  $region1: #{tpu_custom_call.1} parent=0
    #allocation2 [shape = 'u8[8192]{0}', space=vmem, size = 0x2000, scoped, tag = 'input window, operand 0, single buffered']
    #allocation3 [shape = 's32[1]{0}', space=sflag, size = 0x4, scoped, tag = 'scoped memory for tpu_custom_call.1']
    #allocation4 [shape = 's32[1]{0}', space=sflag, size = 0x4, scoped, tag = 'scoped memory for tpu_custom_call.1']
    #allocation5 [shape = 'u8[8192]{0}', space=vmem, size = 0x2000, scoped, tag = 'output window, operand 0, single buffered']
    %11 = vsyncpa [#allocation3], 0
    %12 = vsyncpa [#allocation4], 0
    // Predicated region
    $region2: #{tpu_custom_call.1} parent=1 // pred_check
      _
    $region3: #{tpu_custom_call.1} parent=1 // pred_check_branch
      %14 = sbr.rel (0) target = $region5
    $region4: #{tpu_custom_call.1} parent=1 // pred_region
      %s16 = ssub.s32 256, 256
      %17 = vsyncadd [#allocation3], %s16
      %s18 = sshll.u32 [#allocation2], 4
      %s19 = int_to_ptr.vmem [resolvable:$true] %s18
      %24 = dma.hbm_to_vmem [thread:$0]  %s0, 256, %s19, [#allocation3], 128, 128, 8
    $region5: #{tpu_custom_call.1} parent=1 // pred_fallthru
      _
    // Predicated region
    $region6: #{tpu_custom_call.1} parent=1 // pred_check
      _
    $region7: #{tpu_custom_call.1} parent=1 // pred_check_branch
      %26 = sbr.rel (0) target = $region9
    $region8: #{tpu_custom_call.1} parent=1 // pred_region
      _
    $region9: #{tpu_custom_call.1} parent=1 // pred_fallthru
      _
    // Predicated region
    $region10: #{tpu_custom_call.1} parent=1 // pred_check
      _
    $region11: #{tpu_custom_call.1} parent=1 // pred_check_branch
      %28 = sbr.rel (0) target = $region13
    $region12: #{tpu_custom_call.1} parent=1 // pred_region
      _
    $region13: #{tpu_custom_call.1} parent=1 // pred_fallthru
      _
    // Predicated region
    $region14: #{tpu_custom_call.1} parent=1 // pred_check
      _
    $region15: #{tpu_custom_call.1} parent=1 // pred_check_branch
      %30 = sbr.rel (0) target = $region17
    $region16: #{tpu_custom_call.1} parent=1 // pred_region
      %31 = dma.done [#allocation3], 256
    $region17: #{tpu_custom_call.1} parent=1 // pred_fallthru
      _
    %v32 = vld [vmem:[#allocation2] sm:$0xff]
    %v33 = vld [vmem:[#allocation2 + $0x8] sm:$0xff]
    %v36 = vcombine.high %v32, %v32
    %v37 = vcombine.high %v33, %v33
    %vm40 = vcmask 1043456
    %v41 = vsel %vm40, %v32, 0.0
    %v42 = vsel %vm40, %v36, 0.0
    %v43 = vadd.f32 %v41, %v42
    %44 = vadd.xlane.f32.xlu0 %v43
    %v45 = vpop.xlane.xlu0 %44
    %v46 = vsel %vm40, %v33, 0.0
    %v47 = vsel %vm40, %v37, 0.0
    %v48 = vadd.f32 %v46, %v47
    %49 = vadd.xlane.f32.xlu0 %v48
    %v50 = vpop.xlane.xlu0 %49
    %v51 = vsel %vm40, %v45, 0.0
    %v52 = vsel %vm40, %v50, 0.0
    %v53 = vadd.f32 %v51, %v52
    %v54 = vmul.f32 %v32, %v32
    %v55 = vmul.f32 %v33, %v33
    %v58 = vcombine.high %v54, %v54
    %v59 = vcombine.high %v55, %v55
    %v62 = vsel %vm40, %v54, 0.0
    %v63 = vsel %vm40, %v58, 0.0
    %v64 = vadd.f32 %v62, %v63
    %65 = vadd.xlane.f32.xlu0 %v64
    %v66 = vpop.xlane.xlu0 %65
    %v67 = vsel %vm40, %v55, 0.0
    %v68 = vsel %vm40, %v59, 0.0
    %v69 = vadd.f32 %v67, %v68
    %70 = vadd.xlane.f32.xlu0 %v69
    %v71 = vpop.xlane.xlu0 %70
    %v72 = vsel %vm40, %v66, 0.0
    %v73 = vsel %vm40, %v71, 0.0
    %v74 = vadd.f32 %v72, %v73
    %v75 = vmul.f32 %v53, 0.001953125
    %v76 = vmul.f32 %v74, 0.001953125
    %v77 = vmul.f32 %v75, %v75
    %v78 = vsub.f32 %v76, %v77
    %v79 = vmax.f32 %v78, 0.0
    %v80 = vld [vmem:[%s1] sm:$0xf]
    %v81 = vadd.f32 %v79, 1e-05
    %v82 = vrsqrt.pop %v81
    %v83 = vmul.f32 %v80, %v82
    %v84 = vld [vmem:[%s2] sm:$0xf]
    %v85 = vmul.f32 %v75, %v83
    %v86 = vsub.f32 %v84, %v85
    %88 = vset.pattern.permute.xlu0 0
    %89 = vperm.xlu0 %88, %v83
    %v90 = vpop.permute.xlu0 %89
    %v92 = vunpack.c.l.s4 839922192
    %v93 = vunpack.c.0.s8 %v92
    %v94 = vlaneseq
    %v95 = vshrl.u32 %v94, 7
    %v96 = vsub.s32 %v93, %v95
    %v97 = vrot.slane %v90, %v96
    %v99 = vmul.f32 %v32, %v97
    %v100 = vmul.f32 %v33, %v97
    %102 = vset.pattern.permute.xlu0 0
    %103 = vperm.xlu0 %102, %v86
    %v104 = vpop.permute.xlu0 %103
    %v106 = vunpack.c.l.s4 839922192
    %v107 = vunpack.c.0.s8 %v106
    %v108 = vlaneseq
    %v109 = vshrl.u32 %v108, 7
    %v110 = vsub.s32 %v107, %v109
    %v111 = vrot.slane %v104, %v110
    %v113 = vadd.f32 %v99, %v111
    %v114 = vadd.f32 %v100, %v111
    %115 = vst [vmem:[#allocation5] sm:$0xff] %v113
    %116 = vst [vmem:[#allocation5 + $0x8] sm:$0xff] %v114
    %vm117 = vcmask 3072
    %118 = vst.msk [vmem:[%s4] sm:$0xf] %vm117, %v75
    %119 = vst.msk [vmem:[%s5] sm:$0xf] %vm117, %v79
    // Predicated region
    $region18: #{tpu_custom_call.1} parent=1 // pred_check
      _
    $region19: #{tpu_custom_call.1} parent=1 // pred_check_branch
      %121 = sbr.rel (0) target = $region21
    $region20: #{tpu_custom_call.1} parent=1 // pred_region
      %s123 = ssub.s32 256, 256
      %124 = vsyncadd [#allocation4], %s123
      %s125 = sshll.u32 [#allocation5], 4
      %s126 = int_to_ptr.vmem [resolvable:$true] %s125
      %131 = dma.vmem_to_hbm [thread:$0]  %s126, 256, %s3, [#allocation4], 128, 128, 8
    $region21: #{tpu_custom_call.1} parent=1 // pred_fallthru
      _
    // Predicated region
    $region22: #{tpu_custom_call.1} parent=1 // pred_check
      _
    $region23: #{tpu_custom_call.1} parent=1 // pred_check_branch
      %133 = sbr.rel (0) target = $region25
    $region24: #{tpu_custom_call.1} parent=1 // pred_region
      _
    $region25: #{tpu_custom_call.1} parent=1 // pred_fallthru
      _
    // Predicated region
    $region26: #{tpu_custom_call.1} parent=1 // pred_check
      _
    $region27: #{tpu_custom_call.1} parent=1 // pred_check_branch
      %135 = sbr.rel (0) target = $region29
    $region28: #{tpu_custom_call.1} parent=1 // pred_region
      _
    $region29: #{tpu_custom_call.1} parent=1 // pred_fallthru
      _
    // Predicated region
    $region30: #{tpu_custom_call.1} parent=1 // pred_check
      _
    $region31: #{tpu_custom_call.1} parent=1 // pred_check_branch
      %137 = sbr.rel (0) target = $region33
    $region32: #{tpu_custom_call.1} parent=1 // pred_region
      %138 = dma.done [#allocation4], 256
    $region33: #{tpu_custom_call.1} parent=1 // pred_fallthru
      _
    // Predicated region
    $region34: #{tpu_custom_call.1} parent=1 // pred_check
      _
    $region35: #{tpu_custom_call.1} parent=1 // pred_check_branch
      %140 = sbr.rel (0) target = $region37
    $region36: #{tpu_custom_call.1} parent=1 // pred_region
      _
    $region37: #{tpu_custom_call.1} parent=1 // pred_fallthru
      _
    // Predicated region
    $region38: #{tpu_custom_call.1} parent=1 // pred_check
      _
    $region39: #{tpu_custom_call.1} parent=1 // pred_check_branch
      %142 = sbr.rel (0) target = $region41
    $region40: #{tpu_custom_call.1} parent=1 // pred_region
      _
    $region41: #{tpu_custom_call.1} parent=1 // pred_fallthru
      _
    %143 = vsyncpa [#allocation3], 1
    %144 = vsyncpa [#allocation4], 1

</llo_original>
